<compile_context>
chip_gen: v6e
topology: v6e:2x2x1
jax: 0.10.0
libtpu: 0.0.40
codegen_flags: <defaults>
</compile_context>

<pallas_src>
import functools

import numpy as np
import jax
import jax.numpy as jnp
from jax.experimental import pallas as pl
from jax.experimental.pallas import tpu as pltpu


def _round_up(x, m):
    return ((x + m - 1) // m) * m


# ---------------------------------------------------------------------------
# Fused kernel: gate matmul + bias + sigmoid + elementwise gating + threshold.
# ---------------------------------------------------------------------------
def _gated_unit_kernel(x_ref, wt_ref, b_ref, thr_ref, o_ref):
    # x_ref:   (tm, gD)  packed coefficient rows (g vectors of length D per row)
    # wt_ref:  (gD, gD)  block-diagonal gate weights = kron(I_g, W.T), matmul dtype
    # b_ref:   (1, gD)   tiled gate bias (float32)
    # thr_ref: (1, 1)    threshold scalar in SMEM
    x = x_ref[...]
    x_f32 = x.astype(jnp.float32)
    # Matmul precision is explicit: whatever dtype the packed weights carry.
    z = jnp.dot(x.astype(wt_ref.dtype), wt_ref[...],
                preferred_element_type=jnp.float32) + b_ref[...]
    gate = jax.nn.sigmoid(z)                       # exp/recip on the EUP slot
    gated = (x_f32 * gate).astype(o_ref.dtype)     # value as it would be stored
    thr = thr_ref[0, 0]
    o_ref[...] = jnp.where(jnp.abs(gated.astype(jnp.float32)) < thr,
                           jnp.zeros_like(gated), gated)


# ---------------------------------------------------------------------------
# Host-side weight packing (do once; keep out of the per-call path).
# ---------------------------------------------------------------------------
def pack_gate_params(weight, bias, *, matmul_dtype=jnp.float32):
    """Pack the (D, D) gate Linear into a lane-dense block-diagonal form.

    Returns (wt_packed, b_packed, g) where g coefficient vectors are packed per
    128-wide row and wt_packed = kron(I_g, W.T) in `matmul_dtype`.
    """
    D = weight.shape[0]
    g = 1
    if D < 128 and 128 % D == 0:
        g = 128 // D                      # capped at 128 lanes (never wider)
    # TODO(synk): D that neither divides 128 nor is a multiple of 128 falls back
    # to g=1 (masked lane stores); not exercised by this module's shapes.
    wt = jnp.transpose(weight).astype(jnp.float32)      # rows @ wt == rows @ W.T
    if g > 1:
        wt = jnp.kron(jnp.eye(g, dtype=jnp.float32), wt)  # block-diag (gD, gD)
        b = jnp.tile(bias, g)
    else:
        b = bias
    wt = wt.astype(matmul_dtype)
    b = b.reshape(1, g * D).astype(jnp.float32)
    return wt, b, g


# ---------------------------------------------------------------------------
# Forward pass.
# ---------------------------------------------------------------------------
def apply_gated_unit(coeffs, wt_packed, b_packed, g, threshold, *, block_rows=2048):
    """Run the fused gate/threshold kernel on pre-packed gate params."""
    C, N, D = coeffs.shape
    M = C * N
    gD = g * D

    # Flatten; pad with zero rows so M is a multiple of g (zeros gate to exactly
    # 0 < threshold -> 0, then get sliced off).  Keeps the 128-lane-dense path.
    x = coeffs.reshape(M, D)
    M_pad = _round_up(M, g)
    if M_pad != M:
        x = jnp.concatenate(
            [x, jnp.zeros((M_pad - M, D), dtype=coeffs.dtype)], axis=0)
    M_rows = M_pad // g
    x = x.reshape(M_rows, gD)              # contiguous -> metadata-only reshape

    thr = jnp.asarray(threshold, dtype=jnp.float32).reshape(1, 1)

    # Row tile: large (amortise per-step overhead) but always >= 2 balanced grid
    # steps when there is enough work, so v7x's two TensorCores both get a share
    # and double-buffering actually overlaps DMA with compute.
    if M_rows >= 16:
        tm = min(block_rows, _round_up(pl.cdiv(M_rows, 2), 8))
    else:
        tm = M_rows                        # tiny problem: single full-extent tile
    grid = (pl.cdiv(M_rows, tm),)

    itemsize = jnp.dtype(coeffs.dtype).itemsize
    w_itemsize = jnp.dtype(wt_packed.dtype).itemsize
    # double-buffered input + output tiles + resident weights
    footprint = 2 * 2 * tm * gD * itemsize + gD * gD * w_itemsize
    compiler_kwargs = dict(dimension_semantics=("parallel",))
    if footprint > (12 << 20):
        # Only needed when a very large block_rows is requested (v5e's default
        # scoped VMEM is 16 MiB); harmless elsewhere.
        compiler_kwargs["vmem_limit_bytes"] = min(int(footprint * 2), 64 << 20)

    out = pl.pallas_call(
        _gated_unit_kernel,
        out_shape=jax.ShapeDtypeStruct((M_rows, gD), coeffs.dtype),
        grid=grid,
        in_specs=[
            pl.BlockSpec((tm, gD), lambda i: (i, 0)),
            pl.BlockSpec((gD, gD), lambda i: (0, 0)),     # weights VMEM-resident
            pl.BlockSpec((1, gD), lambda i: (0, 0)),      # bias VMEM-resident
            pl.BlockSpec(memory_space=pltpu.MemorySpace.SMEM),  # threshold scalar
        ],
        out_specs=pl.BlockSpec((tm, gD), lambda i: (i, 0)),
        compiler_params=pltpu.CompilerParams(**compiler_kwargs),
        cost_estimate=pl.CostEstimate(
            flops=2 * M_rows * gD * gD + 5 * M_rows * gD,
            transcendentals=M_rows * gD,
            bytes_accessed=itemsize * 2 * M_rows * gD + w_itemsize * gD * gD
            + 4 * gD + 4,
        ),
    )(x, wt_packed, b_packed, thr)

    out = out.reshape(M_pad, D)[:M].reshape(C, N, D)
    return out


def adaptive_gated_unit(coeffs, weight, bias, threshold, *,
                        block_rows=2048, matmul_dtype=jnp.float32):
    """Convenience one-shot wrapper (packs gate params then runs the kernel)."""
    wt, b, g = pack_gate_params(weight, bias, matmul_dtype=matmul_dtype)
    return apply_gated_unit(coeffs, wt, b, g, threshold, block_rows=block_rows)


# ---------------------------------------------------------------------------
# Pure-numpy reference for validation.
# ---------------------------------------------------------------------------
def _reference(coeffs, weight, bias, threshold):
    z = coeffs @ weight.T + bias
    gate = 1.0 / (1.0 + np.exp(-z))
    gated = coeffs * gate
    return gated, np.where(np.abs(gated) < threshold, 0.0, gated)


if __name__ == "__main__":
    key = jax.random.PRNGKey(0)
    channels, signal_length, level = 4, 64, 3
    n_nodes = 2 ** level                       # 8 freq-ordered packet nodes
    d = signal_length // 2 ** level            # 8 samples per node (= Linear dim)

    k_c, k_w, k_b = jax.random.split(key, 3)
    coeffs = jax.random.normal(k_c, (channels, n_nodes, d), dtype=jnp.float32)
    weight = jax.random.normal(k_w, (d, d), dtype=jnp.float32) / np.sqrt(d)
    bias = 0.1 * jax.random.normal(k_b, (d,), dtype=jnp.float32)
    threshold = jnp.float32(0.1)               # nn.Parameter(torch.tensor(0.1))

    thr_np = 0.1
    coeffs_np = np.asarray(coeffs, np.float32)
    weight_np = np.asarray(weight, np.float32)
    bias_np = np.asarray(bias, np.float32)
    ref_gated, ref = _reference(coeffs_np, weight_np, bias_np, thr_np)

    # --- f32 matmul path (PyTorch-exact), packed params hoisted + jitted ------
    wt_f32, b_f32, g = pack_gate_params(weight, bias, matmul_dtype=jnp.float32)
    fwd_f32 = jax.jit(functools.partial(apply_gated_unit, g=g, threshold=threshold))
    out = jax.block_until_ready(fwd_f32(coeffs, wt_f32, b_f32))
    np.testing.assert_allclose(np.asarray(out), ref, rtol=1e-5, atol=1e-5)

    # --- bf16 matmul path (perf option on v5e): looser tolerance, and skip the
    # handful of elements whose magnitude sits right at the threshold boundary.
    wt_bf, b_bf, g_bf = pack_gate_params(weight, bias, matmul_dtype=jnp.bfloat16)
    out_bf = jax.block_until_ready(
        apply_gated_unit(coeffs, wt_bf, b_bf, g_bf, threshold))
    far_from_thr = np.abs(np.abs(ref_gated) - thr_np) > 5e-3
    np.testing.assert_allclose(np.asarray(out_bf)[far_from_thr], ref[far_from_thr],
                               rtol=2e-2, atol=2e-2)

    # --- padded path: M = 3*8 = 24 rows is not a multiple of g = 16 -----------
    coeffs3 = coeffs[:3]
    out3 = jax.block_until_ready(
        apply_gated_unit(coeffs3, wt_f32, b_f32, g, threshold))
    _, ref3 = _reference(np.asarray(coeffs3, np.float32), weight_np, bias_np, thr_np)
    np.testing.assert_allclose(np.asarray(out3), ref3, rtol=1e-5, atol=1e-5)

    # Mirror the PyTorch module's nested-list return structure (host plumbing).
    gated_list = [[out[c, p] for p in range(n_nodes)] for c in range(channels)]
    assert out.shape == (channels, n_nodes, d)
    assert len(gated_list) == channels and len(gated_list[0]) == n_nodes

    print("KERNEL_OK")
</pallas_src>

<mosaic_0001>
module attributes {stable_mosaic.version = 11 : i64} {
  func.func @_gated_unit_kernel(%arg0: i32, %arg1: memref<2x128xf32, #tpu.memory_space<vmem>>, %arg2: memref<128x128xf32, #tpu.memory_space<vmem>>, %arg3: memref<1x128xf32, #tpu.memory_space<vmem>>, %arg4: memref<1x1xf32, #tpu.memory_space<smem>>, %arg5: memref<2x128xf32, #tpu.memory_space<vmem>>) attributes {dimension_semantics = [#tpu.dimension_semantics<parallel>], iteration_bounds = array<i64: 1>, scalar_prefetch = 0 : i64, scratch_operands = 0 : i64, tpu.core_type = #tpu.core_type<tc>, window_params = [{transform_indices = @transform_0, window_bounds = array<i64: 2, 128>}, {pipeline_mode = #tpu.pipeline_mode<synchronous>, transform_indices = @transform_1, window_bounds = array<i64: 128, 128>}, {pipeline_mode = #tpu.pipeline_mode<synchronous>, transform_indices = @transform_2, window_bounds = array<i64: 1, 128>}, {transform_indices = @transform_3, window_bounds = array<i64: 1, 1>}, {transform_indices = @transform_4, window_bounds = array<i64: 2, 128>}]} {
    %c0 = arith.constant 0 : index
    %c0_0 = arith.constant 0 : index
    %0 = vector.load %arg1[%c0, %c0_0] : memref<2x128xf32, #tpu.memory_space<vmem>>, vector<2x128xf32>
    %c0_1 = arith.constant 0 : index
    %c0_2 = arith.constant 0 : index
    %1 = vector.load %arg2[%c0_1, %c0_2] : memref<128x128xf32, #tpu.memory_space<vmem>>, vector<128x128xf32>
    %cst = arith.constant dense<0.000000e+00> : vector<2x128xf32>
    %2 = tpu.matmul %0, %1, %cst {dimension_numbers = #tpu.dot_dimension_numbers<[1], [0], [0], [1], [0, 0, 1, 1], [], []>} : vector<2x128xf32>, vector<128x128xf32>, vector<2x128xf32> -> vector<2x128xf32>
    %c0_3 = arith.constant 0 : index
    %c0_4 = arith.constant 0 : index
    %3 = vector.load %arg3[%c0_3, %c0_4] : memref<1x128xf32, #tpu.memory_space<vmem>>, vector<1x128xf32>
    %4 = vector.broadcast %3 : vector<1x128xf32> to vector<2x128xf32>
    %5 = arith.addf %2, %4 : vector<2x128xf32>
    %6 = arith.negf %5 : vector<2x128xf32>
    %7 = math.exp %6 : vector<2x128xf32>
    %cst_5 = arith.constant 1.000000e+00 : f32
    %8 = vector.broadcast %cst_5 : f32 to vector<2x128xf32>
    %9 = arith.addf %8, %7 : vector<2x128xf32>
    %10 = arith.divf %8, %9 : vector<2x128xf32>
    %11 = arith.mulf %0, %10 : vector<2x128xf32>
    %c0_6 = arith.constant 0 : index
    %c0_7 = arith.constant 0 : index
    %12 = memref.load %arg4[%c0_6, %c0_7] : memref<1x1xf32, #tpu.memory_space<smem>>
    %13 = math.absf %11 : vector<2x128xf32>
    %14 = vector.broadcast %12 : f32 to vector<2x128xf32>
    %15 = arith.cmpf olt, %13, %14 : vector<2x128xf32>
    %cst_8 = arith.constant 0.000000e+00 : f32
    %16 = vector.broadcast %cst_8 : f32 to vector<2x128xf32>
    %17 = arith.select %15, %16, %11 : vector<2x128xi1>, vector<2x128xf32>
    %c0_9 = arith.constant 0 : index
    %c0_10 = arith.constant 0 : index
    %18 = vector.load %arg5[%c0_9, %c0_10] : memref<2x128xf32, #tpu.memory_space<vmem>>, vector<2x128xf32>
    tpu.vector_store %arg5[%c0_9, %c0_10], %17 {strides = array<i32>} : memref<2x128xf32, #tpu.memory_space<vmem>>, vector<2x128xf32>,
    return
  }
  func.func @transform_0(%arg0: i32) -> (i32, i32) {
    %c0_i32 = arith.constant 0 : i32
    %c0_i32_0 = arith.constant 0 : i32
    return %arg0, %c0_i32 : i32, i32
  }
  func.func @transform_1(%arg0: i32) -> (i32, i32) {
    %c0_i32 = arith.constant 0 : i32
    %c0_i32_0 = arith.constant 0 : i32
    %c0_i32_1 = arith.constant 0 : i32
    return %c0_i32, %c0_i32_0 : i32, i32
  }
  func.func @transform_2(%arg0: i32) -> (i32, i32) {
    %c0_i32 = arith.constant 0 : i32
    %c0_i32_0 = arith.constant 0 : i32
    %c0_i32_1 = arith.constant 0 : i32
    return %c0_i32, %c0_i32_0 : i32, i32
  }
  func.func @transform_3(%arg0: i32) -> (i32, i32) {
    %c0_i32 = arith.constant 0 : i32
    %c0_i32_0 = arith.constant 0 : i32
    %c0_i32_1 = arith.constant 0 : i32
    return %c0_i32, %c0_i32_0 : i32, i32
  }
  func.func @transform_4(%arg0: i32) -> (i32, i32) {
    %c0_i32 = arith.constant 0 : i32
    %c0_i32_0 = arith.constant 0 : i32
    return %arg0, %c0_i32 : i32, i32
  }
}

</mosaic_0001>

<llo_original>
// kernel: apply_gated_unit.1
$region0: #{apply_gated_unit.1}
  #allocation0 [shape = 'u32[]', space=smem, size = 0x4, offset = 0x4, fixed_abs, tag = 'smem constant byte address 0x4 - core index']
  #allocation1 [shape = 'u32[144,128]{1,0:T(1,128)}', space=vmem, size = 0x12000, scoped, tag = 'internal scratch']
  #allocation2 [shape = 'f32[1,1]{1,0:T(1,128)S(6)}', space=smem, size = 0x200, scoped, tag = 'scoped memory for apply_gated_unit.1']
  %s0 = inlined_call_operand.vmem [shape: f32[2,128], index: 0, kind: input, shape index: {}]
  %s1 = inlined_call_operand.hbm [shape: f32[128,128], index: 1, kind: input, shape index: {}]
  %s2 = inlined_call_operand.vmem [shape: f32[1,128], index: 2, kind: input, shape index: {}]
  %s3 = inlined_call_operand.<no memory space> [shape: f32[1,1], index: 3, kind: input, shape index: {}]
  %s4 = inlined_call_operand.vmem [shape: f32[2,128], index: 4, kind: output, shape index: {}]
  %s5 = sld [smem:[#allocation0]]
  $region30: #{apply_gated_unit.1} parent=0
    _
  %s7 = ssub.s32 1, %s5
  %s8 = scalar_select 0, %s7, %s5
  %9 = sst [smem:[#allocation2]] %s3
  $region1: #{apply_gated_unit.1} parent=0
    #allocation3 [shape = 'u8[65536]{0}', space=vmem, size = 0x10000, scoped, tag = 'input window, operand 1, single buffered']
    #allocation4 [shape = 's32[1]{0}', space=sflag, size = 0x4, scoped, tag = 'scoped memory for apply_gated_unit.1']
    %10 = vsyncpa [#allocation4], 0
    // Predicated region
    $region2: #{apply_gated_unit.1} parent=1 // pred_check
      _
    $region3: #{apply_gated_unit.1} parent=1 // pred_check_branch
      %12 = sbr.rel (0) target = $region5
    $region4: #{apply_gated_unit.1} parent=1 // pred_region
      _
    $region5: #{apply_gated_unit.1} parent=1 // pred_fallthru
      _
    // Predicated region
    $region6: #{apply_gated_unit.1} parent=1 // pred_check
      _
    $region7: #{apply_gated_unit.1} parent=1 // pred_check_branch
      %14 = sbr.rel (0) target = $region9
    $region8: #{apply_gated_unit.1} parent=1 // pred_region
      %s16 = ssub.s32 2048, 2048
      %17 = vsyncadd [#allocation4], %s16
      %s18 = sshll.u32 [#allocation3], 4
      %s19 = int_to_ptr.vmem [resolvable:$true] %s18
      %24 = dma.hbm_to_vmem [thread:$0]  %s1, 2048, %s19, [#allocation4], 128, 128, 8
    $region9: #{apply_gated_unit.1} parent=1 // pred_fallthru
      _
    // Predicated region
    $region10: #{apply_gated_unit.1} parent=1 // pred_check
      _
    $region11: #{apply_gated_unit.1} parent=1 // pred_check_branch
      %26 = sbr.rel (0) target = $region13
    $region12: #{apply_gated_unit.1} parent=1 // pred_region
      _
    $region13: #{apply_gated_unit.1} parent=1 // pred_fallthru
      _
    // Predicated region
    $region14: #{apply_gated_unit.1} parent=1 // pred_check
      _
    $region15: #{apply_gated_unit.1} parent=1 // pred_check_branch
      %28 = sbr.rel (0) target = $region17
    $region16: #{apply_gated_unit.1} parent=1 // pred_region
      _
    $region17: #{apply_gated_unit.1} parent=1 // pred_fallthru
      _
    // Predicated region
    $region18: #{apply_gated_unit.1} parent=1 // pred_check
      _
    $region19: #{apply_gated_unit.1} parent=1 // pred_check_branch
      %30 = sbr.rel (0) target = $region21
    $region20: #{apply_gated_unit.1} parent=1 // pred_region
      %31 = dma.done [#allocation4], 2048
    $region21: #{apply_gated_unit.1} parent=1 // pred_fallthru
      _
    %v32 = vld [vmem:[%s0] sm:$0x3]
    %v33 = vld [vmem:[#allocation3] sm:$0xff]
    %v34 = vld [vmem:[#allocation3 + $0x8] sm:$0xff]
    %v35 = vld [vmem:[#allocation3 + $0x10] sm:$0xff]
    %v36 = vld [vmem:[#allocation3 + $0x18] sm:$0xff]
    %v37 = vld [vmem:[#allocation3 + $0x20] sm:$0xff]
    %v38 = vld [vmem:[#allocation3 + $0x28] sm:$0xff]
    %v39 = vld [vmem:[#allocation3 + $0x30] sm:$0xff]
    %v40 = vld [vmem:[#allocation3 + $0x38] sm:$0xff]
    %v41 = vld [vmem:[#allocation3 + $0x40] sm:$0xff]
    %v42 = vld [vmem:[#allocation3 + $0x48] sm:$0xff]
    %v43 = vld [vmem:[#allocation3 + $0x50] sm:$0xff]
    %v44 = vld [vmem:[#allocation3 + $0x58] sm:$0xff]
    %v45 = vld [vmem:[#allocation3 + $0x60] sm:$0xff]
    %v46 = vld [vmem:[#allocation3 + $0x68] sm:$0xff]
    %v47 = vld [vmem:[#allocation3 + $0x70] sm:$0xff]
    %v48 = vld [vmem:[#allocation3 + $0x78] sm:$0xff]
    %v49 = vld [vmem:[%s2] sm:$0x1]
    %v51 = vlaneseq
    %v52 = vshrl.u32 %v51, 7
    %v53 = vsub.s32 0, %v52
    %v54 = vrot.slane %v49, %v53
    %56 = vmatprep.subr.mxu0 0.0
    %57 = vmatpush1.msra.mxu0 %v48
    %58 = vmatprep.subr.mxu0 0.0
    %59 = vmatpush1.msra.mxu0 %v47
    %60 = vmatprep.subr.mxu0 0.0
    %61 = vmatpush1.msra.mxu0 %v46
    %62 = vmatprep.subr.mxu0 0.0
    %63 = vmatpush1.msra.mxu0 %v45
    %64 = vmatprep.subr.mxu0 0.0
    %65 = vmatpush1.msra.mxu0 %v44
    %66 = vmatprep.subr.mxu0 0.0
    %67 = vmatpush1.msra.mxu0 %v43
    %68 = vmatprep.subr.mxu0 0.0
    %69 = vmatpush1.msra.mxu0 %v42
    %70 = vmatprep.subr.mxu0 0.0
    %71 = vmatpush1.msra.mxu0 %v41
    %72 = vmatprep.subr.mxu0 0.0
    %73 = vmatpush1.msra.mxu0 %v40
    %74 = vmatprep.subr.mxu0 0.0
    %75 = vmatpush1.msra.mxu0 %v39
    %76 = vmatprep.subr.mxu0 0.0
    %77 = vmatpush1.msra.mxu0 %v38
    %78 = vmatprep.subr.mxu0 0.0
    %79 = vmatpush1.msra.mxu0 %v37
    %80 = vmatprep.subr.mxu0 0.0
    %81 = vmatpush1.msra.mxu0 %v36
    %82 = vmatprep.subr.mxu0 0.0
    %83 = vmatpush1.msra.mxu0 %v35
    %84 = vmatprep.subr.mxu0 0.0
    %85 = vmatpush1.msra.mxu0 %v34
    %86 = vmatprep.subr.mxu0 0.0
    %87 = vmatpush1.msra.mxu0 %v33
    %88 = vmatprep.subr.mxu0 0.0
    %89 = vmatpush2.msra.mxu0 0.0
    %90 = vmatprep.subr.mxu0 0.0
    %91 = vmatpush2.msra.mxu0 0.0
    %92 = vmatprep.subr.mxu0 0.0
    %93 = vmatpush2.msra.mxu0 0.0
    %94 = vmatprep.subr.mxu0 0.0
    %95 = vmatpush2.msra.mxu0 0.0
    %96 = vmatprep.subr.mxu0 0.0
    %97 = vmatpush2.msra.mxu0 0.0
    %98 = vmatprep.subr.mxu0 0.0
    %99 = vmatpush2.msra.mxu0 0.0
    %100 = vmatprep.subr.mxu0 0.0
    %101 = vmatpush2.msra.mxu0 0.0
    %102 = vmatprep.subr.mxu0 0.0
    %103 = vmatpush2.msra.mxu0 0.0
    %104 = vmatprep.subr.mxu0 0.0
    %105 = vmatpush2.msra.mxu0 0.0
    %106 = vmatprep.subr.mxu0 0.0
    %107 = vmatpush2.msra.mxu0 0.0
    %108 = vmatprep.subr.mxu0 0.0
    %109 = vmatpush2.msra.mxu0 0.0
    %110 = vmatprep.subr.mxu0 0.0
    %111 = vmatpush2.msra.mxu0 0.0
    %112 = vmatprep.subr.mxu0 0.0
    %113 = vmatpush2.msra.mxu0 0.0
    %114 = vmatprep.subr.mxu0 0.0
    %115 = vmatpush2.msra.mxu0 0.0
    %116 = vmatprep.subr.mxu0 0.0
    %117 = vmatpush2.msra.mxu0 0.0
    %118 = vmatprep.subr.mxu0 0.0
    %119 = vmatpush2.msra.mxu0 0.0
    %120 = vmatprep.mubr.f32.mxu0 0.0
    %121 = vmatmul.mubr.f32.gmra.mxu0 %v32
    %v122 = vpop.f32.mrf.mxu0
    %v123 = vadd.f32 %v54, %v122
    %v124 = vpop.f32.mrf.mxu0
    %125 = vdwg.mxu0
    %v126 = vxor.u32 %v123, 2147483648
    %v127 = vmul.f32 %v126, 1.442695
    %v128 = vpow.pop %v127
    %v129 = vadd.f32 %v128, 1.0
    %v130 = vrcp.pop %v129
    %v131 = vmul.f32 1.0, %v130
    %v132 = vmul.f32 %v32, %v131
    %s133 = sld [smem:[#allocation2]]
    %v134 = vand.u32 2147483647, %v132
    %v135 = vstv %s133
    %vm136 = vcmp.lt.f32.partialorder %v134, %v135
    %v137 = vsel %vm136, 0.0, %v132
    %138 = vst [vmem:[%s4] sm:$0x3] %v137
    // Predicated region
    $region22: #{apply_gated_unit.1} parent=1 // pred_check
      _
    $region23: #{apply_gated_unit.1} parent=1 // pred_check_branch
      %140 = sbr.rel (0) target = $region25
    $region24: #{apply_gated_unit.1} parent=1 // pred_region
      _
    $region25: #{apply_gated_unit.1} parent=1 // pred_fallthru
      _
    // Predicated region
    $region26: #{apply_gated_unit.1} parent=1 // pred_check
      _
    $region27: #{apply_gated_unit.1} parent=1 // pred_check_branch
      %142 = sbr.rel (0) target = $region29
    $region28: #{apply_gated_unit.1} parent=1 // pred_region
      _
    $region29: #{apply_gated_unit.1} parent=1 // pred_fallthru
      _
    %143 = vsyncpa [#allocation4], 1

</llo_original>
